<compile_context>
chip_gen: v5e
topology: v5e:2x2
jax: 0.10.0
libtpu: 0.0.40
codegen_flags: <defaults>
</compile_context>

<pallas_src>
import functools

import jax
import jax.numpy as jnp
from jax.experimental import pallas as pl
from jax.experimental.pallas import tpu as pltpu

_MIB = 1024 * 1024


# ---------------------------------------------------------------------------
# tile-size helpers (respect the TPU (8, 128) block constraints)
# ---------------------------------------------------------------------------

def _pick_row_tile(n, max_tile):
    """Second-to-last dim tile: multiple of 8 (or the full dim)."""
    if n <= max_tile:
        return n
    for c in (1024, 512, 256, 128, 64, 32, 16, 8):
        if c <= max_tile and n % c == 0:
            return c
    return n  # full dim is always legal


def _pick_lane_tile(n, max_tile):
    """Last dim tile: multiple of 128 (or the full dim)."""
    if n <= max_tile:
        return n
    for c in (1024, 512, 384, 256, 128):
        if c <= max_tile and n % c == 0:
            return c
    return n


def _pick_sym_tile(n, max_tile):
    """Common row/col tile for symmetric launches (multiple of 128 or full)."""
    if n <= max_tile:
        return n
    for c in (1024, 512, 384, 256, 128):
        if c <= max_tile and n % c == 0:
            return c
    return n


def _pick_k_tile(d, max_tile):
    """Contraction (feature) tile: multiple of 128 (or the full dim)."""
    if d <= max_tile:
        return d
    if d % 128 == 0:
        for c in (2048, 1024, 512, 384, 256, 128):
            if c <= max_tile and d % c == 0:
                return c
    return d
    # TODO(synk): pad/mask path for D that is huge and not 128-divisible.


# ---------------------------------------------------------------------------
# prologue: per-row squared norms + per-feature column sums (tiled over rows)
# ---------------------------------------------------------------------------

def _row_stats_kernel(x_ref, norms_ref, colsum_ref):
    i = pl.program_id(0)
    x = x_ref[...].astype(jnp.float32)
    norms_ref[...] = jnp.sum(x * x, axis=1, keepdims=True)

    @pl.when(i == 0)
    def _():
        colsum_ref[...] = jnp.zeros_like(colsum_ref)

    colsum_ref[...] += jnp.sum(x, axis=0, keepdims=True)


def _row_stats(x):
    n, d = x.shape
    itemsize = jnp.dtype(x.dtype).itemsize
    budget_rows = max(8, (4 * _MIB) // max(1, itemsize * d))
    tb = _pick_row_tile(n, min(512, budget_rows))
    norms, colsum = pl.pallas_call(
        _row_stats_kernel,
        out_shape=(jax.ShapeDtypeStruct((n, 1), jnp.float32),
                   jax.ShapeDtypeStruct((1, d), jnp.float32)),
        grid=(n // tb,),
        in_specs=[pl.BlockSpec((tb, d), lambda i: (i, 0))],
        out_specs=(pl.BlockSpec((tb, 1), lambda i: (i, 0)),
                   pl.BlockSpec((1, d), lambda i: (0, 0))),
        compiler_params=pltpu.CompilerParams(
            dimension_semantics=("arbitrary",)),   # colsum is an accumulator
    )(x)
    return norms, colsum


# ---------------------------------------------------------------------------
# main tiled pairwise RBF-kernel-sum kernel
# ---------------------------------------------------------------------------

def _ipow(x, p):
    r = x
    for _ in range(p - 1):
        r = r * x
    return r


def _rbf_pair_kernel(i_ids_ref, j_ids_ref, w_ref, coefs_ref,
                     a_ref, bT_ref, an_ref, bn_ref, out_ref, *scratch,
                     kernel_num, int_mul, nk, lanes, n_lane_chunks,
                     subl, n_sub_chunks):
    t = pl.program_id(0)
    k = pl.program_id(1)

    # (tm, tk) . (tk, tn) -- native MXU feed, f32 accumulation.
    partial = jax.lax.dot_general(
        a_ref[...], bT_ref[...], (((1,), (0,)), ((), ())),
        preferred_element_type=jnp.float32)

    def _finalize(gram):
        # ||a_r - b_c||^2, clamped against tiny negative rounding error.
        l2 = jnp.maximum(an_ref[...] + bn_ref[...] - 2.0 * gram, 0.0)
        if int_mul is not None:
            # One exp + repeated integer powers (exact for integer kernel_mul):
            #   exp(-l2/(bw*mul^q)) = exp(-l2/(bw*mul^(K-1))) ** mul^(K-1-q)
            e = jnp.exp(l2 * coefs_ref[0, kernel_num - 1])
            kern = e
            for _ in range(kernel_num - 1):
                e = _ipow(e, int_mul)
                kern = kern + e
        else:
            kern = jnp.exp(l2 * coefs_ref[0, 0])
            for q in range(1, kernel_num):
                kern = kern + jnp.exp(l2 * coefs_ref[0, q])

        # Lane-dense fold: (tm, tn) -> (tm, lanes) -> (subl, lanes).
        # Static 128-lane / 8-sublane slices -> pure VPU adds, no XLU reduce.
        acc = kern[:, 0:lanes]
        for q in range(1, n_lane_chunks):
            acc = acc + kern[:, q * lanes:(q + 1) * lanes]
        red = acc[0:subl, :]
        for p in range(1, n_sub_chunks):
            red = red + acc[p * subl:(p + 1) * subl, :]

        w = w_ref[t].astype(jnp.float32)   # 2.0 for off-diagonal tiles of K_SS/K_TT
        out_ref[0] = w * red

    if nk == 1:
        _finalize(partial)
    else:
        gram_ref = scratch[0]

        @pl.when(k == 0)
        def _():
            gram_ref[...] = partial

        @pl.when(k > 0)
        def _():
            gram_ref[...] += partial

        pl.when(k == nk - 1)(lambda: _finalize(gram_ref[...]))


def _rbf_pair_sums(a, b_t, a_norms, b_norms_row, coefs, *, symmetric,
                   kernel_num, int_mul, max_bm, max_bn, max_bk):
    """sum_{r,c} sum_q exp(coef_q * ||a_r - b_c||^2), tiled over tile pairs."""
    na, d = a.shape
    d2, nb = b_t.shape
    assert d2 == d

    if symmetric:
        assert na == nb
        tm = tn = _pick_sym_tile(na, min(max_bm, max_bn))
    else:
        tm = _pick_row_tile(na, max_bm)
        tn = _pick_lane_tile(nb, max_bn)

    itemsize = jnp.dtype(a.dtype).itemsize
    eff_bk = max_bk if itemsize <= 2 else max(128, max_bk // 2)
    tk = _pick_k_tile(d, eff_bk)
    ni, nj, nk = na // tm, nb // tn, d // tk

    # Tile-pair schedule (upper triangle only for the symmetric launches).
    if symmetric:
        pairs = [(i, j) for i in range(ni) for j in range(i, nj)]
        weights = [1 if i == j else 2 for (i, j) in pairs]
    else:
        pairs = [(i, j) for i in range(ni) for j in range(nj)]
        weights = [1] * len(pairs)
    ntiles = len(pairs)
    i_ids = jnp.asarray([p[0] for p in pairs], dtype=jnp.int32)
    j_ids = jnp.asarray([p[1] for p in pairs], dtype=jnp.int32)
    w_arr = jnp.asarray(weights, dtype=jnp.int32)

    lanes = 128 if tn % 128 == 0 else tn
    n_lane_chunks = tn // lanes
    subl = 8 if tm % 8 == 0 else tm
    n_sub_chunks = tm // subl

    kernel = functools.partial(
        _rbf_pair_kernel, kernel_num=kernel_num, int_mul=int_mul, nk=nk,
        lanes=lanes, n_lane_chunks=n_lane_chunks, subl=subl,
        n_sub_chunks=n_sub_chunks)

    scratch_shapes = []
    if nk > 1:
        scratch_shapes.append(pltpu.VMEM((tm, tn), jnp.float32))

    # Working-set estimate -> explicit scoped-VMEM limit (capped for v7x).
    est = (2 * (tm * tk + tk * tn) * itemsize          # double-buffered a, bT
           + 2 * (tm + tn) * 4                          # norms
           + 2 * subl * lanes * 4                       # output blocks
           + (tm * tn * 4 if nk > 1 else 0)             # gram scratch
           + 4 * tm * tn * 4)                           # epilogue temps
    vmem_limit = int(min(max(32 * _MIB, 2 * est), 64 * _MIB))

    grid_spec = pltpu.PrefetchScalarGridSpec(
        num_scalar_prefetch=3,                          # i_ids, j_ids, weights
        grid=(ntiles, nk),
        in_specs=[
            pl.BlockSpec(memory_space=pltpu.MemorySpace.SMEM),   # coefs
            pl.BlockSpec((tm, tk), lambda t, k, i_ids, j_ids, w: (i_ids[t], k)),
            pl.BlockSpec((tk, tn), lambda t, k, i_ids, j_ids, w: (k, j_ids[t])),
            pl.BlockSpec((tm, 1), lambda t, k, i_ids, j_ids, w: (i_ids[t], 0)),
            pl.BlockSpec((1, tn), lambda t, k, i_ids, j_ids, w: (0, j_ids[t])),
        ],
        out_specs=pl.BlockSpec((1, subl, lanes),
                               lambda t, k, i_ids, j_ids, w: (t, 0, 0)),
        scratch_shapes=scratch_shapes,
    )
    partials = pl.pallas_call(
        kernel,
        out_shape=jax.ShapeDtypeStruct((ntiles, subl, lanes), jnp.float32),
        grid_spec=grid_spec,
        compiler_params=pltpu.CompilerParams(
            dimension_semantics=("parallel", "arbitrary"),
            vmem_limit_bytes=vmem_limit),
    )(i_ids, j_ids, w_arr, coefs, a, b_t, a_norms, b_norms_row)
    return jnp.sum(partials)


# ---------------------------------------------------------------------------
# module wrapper
# ---------------------------------------------------------------------------

class MMDLossPallas:
    """Pallas TPU equivalent of the PyTorch MMD_loss module (forward only)."""

    def __init__(self, kernel_type='rbf', kernel_mul=2.0, kernel_num=5):
        self.kernel_num = kernel_num
        self.kernel_mul = kernel_mul
        self.fix_sigma = None          # always None in the reference __init__
        self.kernel_type = kernel_type

    def __call__(self, source, target, *, matmul_dtype=jnp.bfloat16,
                 max_block_m=512, max_block_n=512, max_block_k=2048):
        if self.kernel_type == 'linear':
            ns, nt = source.shape[0], target.shape[0]
            _, colsum_s = _row_stats(source)
            _, colsum_t = _row_stats(target)
            delta = colsum_s / float(ns) - colsum_t / float(nt)   # (1, D) f32
            return jnp.sum(delta * delta)

        if self.kernel_type != 'rbf':
            raise ValueError(f"unknown kernel_type {self.kernel_type!r}")

        bs = source.shape[0]
        bt = target.shape[0]
        n = bs + bt

        # Center by the global column mean (distances are translation
        # invariant) -> no cancellation in the closed-form bandwidth.
        src32 = source.astype(jnp.float32)
        tgt32 = target.astype(jnp.float32)
        mu = (jnp.sum(src32, axis=0) + jnp.sum(tgt32, axis=0)) / float(n)
        src_c = src32 - mu[None, :]
        tgt_c = tgt32 - mu[None, :]

        norms_s, colsum_s = _row_stats(src_c)
        norms_t, colsum_t = _row_stats(tgt_c)

        # Closed-form bandwidth: sum_ij ||xi-xj||^2 = 2N*S - 2*||sum_i xi||^2.
        if self.fix_sigma:
            bandwidth = jnp.float32(self.fix_sigma)
        else:
            total_sq = jnp.sum(norms_s) + jnp.sum(norms_t)
            total_sum = colsum_s + colsum_t                 # ~0 after centering
            sum_l2 = 2.0 * n * total_sq - 2.0 * jnp.sum(total_sum * total_sum)
            # bandwidth == 0 (source == target) -> inf/NaN, same as PyTorch.
            bandwidth = sum_l2 / float(n * n - n)
        bandwidth = bandwidth / float(self.kernel_mul ** (self.kernel_num // 2))

        mul_pows = jnp.asarray(
            [float(self.kernel_mul) ** q for q in range(self.kernel_num)],
            dtype=jnp.float32)
        coefs = (-1.0 / (bandwidth * mul_pows)).astype(jnp.float32)
        coefs = coefs.reshape(1, self.kernel_num)

        km = float(self.kernel_mul)
        int_mul = int(km) if (km.is_integer() and km >= 1.0) else None

        # bf16 (default) MXU operands + one-time pre-transposed RHS copies.
        md = jnp.dtype(matmul_dtype)
        src_m = src_c.astype(md)
        tgt_m = tgt_c.astype(md)
        src_mT = src_m.T                                     # (D, bs)
        tgt_mT = tgt_m.T                                     # (D, bt)

        norms_s_row = norms_s.reshape(1, bs)
        norms_t_row = norms_t.reshape(1, bt)

        pair = functools.partial(
            _rbf_pair_sums, coefs=coefs, kernel_num=self.kernel_num,
            int_mul=int_mul, max_bm=max_block_m, max_bn=max_block_n,
            max_bk=max_block_k)

        ss = pair(src_m, src_mT, norms_s, norms_s_row, symmetric=True)
        tt = pair(tgt_m, tgt_mT, norms_t, norms_t_row, symmetric=True)
        st = pair(src_m, tgt_mT, norms_s, norms_t_row, symmetric=False)

        # mean(K_SS) + mean(K_TT) - mean(K_ST) - mean(K_TS); K_TS = K_ST^T.
        return (ss / float(bs * bs) + tt / float(bt * bt)
                - 2.0 * st / float(bs * bt))


# ---------------------------------------------------------------------------
# pure-JAX reference (mirrors the PyTorch code) + demo
# ---------------------------------------------------------------------------

def _mmd_rbf_ref(source, target, kernel_mul=2.0, kernel_num=5):
    total = jnp.concatenate([source, target], axis=0).astype(jnp.float32)
    n = total.shape[0]
    diff = total[None, :, :] - total[:, None, :]
    l2 = jnp.sum(diff * diff, axis=2)
    bw = jnp.sum(l2) / (n * n - n)
    bw = bw / (kernel_mul ** (kernel_num // 2))
    kern = sum(jnp.exp(-l2 / (bw * kernel_mul ** i)) for i in range(kernel_num))
    b = source.shape[0]
    return (jnp.mean(kern[:b, :b]) + jnp.mean(kern[b:, b:])
            - jnp.mean(kern[:b, b:]) - jnp.mean(kern[b:, :b]))


if __name__ == "__main__":
    key = jax.random.PRNGKey(0)
    k1, k2, k3, k4 = jax.random.split(key, 4)

    mmd_rbf = MMDLossPallas('rbf', kernel_mul=2.0, kernel_num=5)

    # Test 1: small shapes, exact f32-matmul path (tight tolerance).
    B, D = 8, 32
    src = jax.random.normal(k1, (B, D), dtype=jnp.float32)
    tgt = jax.random.normal(k2, (B, D), dtype=jnp.float32) + 0.5
    out1 = mmd_rbf(src, tgt, matmul_dtype=jnp.float32)
    jax.block_until_ready(out1)
    ref1 = _mmd_rbf_ref(src, tgt, 2.0, 5)
    assert jnp.allclose(out1, ref1, rtol=1e-3, atol=1e-3), (out1, ref1)

    # Test 2: larger shapes with small blocks so the triangular multi-tile
    # schedule, the k-split gram scratch and the lane-dense epilogue are all
    # exercised (bf16 MXU operands -> looser tolerance).
    B2, D2 = 256, 256
    src2 = jax.random.normal(k3, (B2, D2), dtype=jnp.float32)
    tgt2 = jax.random.normal(k4, (B2, D2), dtype=jnp.float32) * 1.3 + 0.2
    ref2 = _mmd_rbf_ref(src2, tgt2, 2.0, 5)
    out2 = mmd_rbf(src2, tgt2, max_block_m=128, max_block_n=128,
                   max_block_k=128)
    jax.block_until_ready(out2)
    assert jnp.allclose(out2, ref2, rtol=2e-2, atol=2e-3), (out2, ref2)

    # Test 3: same data, exact f32 path with default (single-tile) blocks.
    out3 = mmd_rbf(src2, tgt2, matmul_dtype=jnp.float32)
    jax.block_until_ready(out3)
    assert jnp.allclose(out3, ref2, rtol=5e-3, atol=5e-4), (out3, ref2)

    # Test 4: non-integer kernel_mul -> per-scale exp fallback path.
    mmd_rbf25 = MMDLossPallas('rbf', kernel_mul=2.5, kernel_num=3)
    out4 = mmd_rbf25(src, tgt, matmul_dtype=jnp.float32)
    jax.block_until_ready(out4)
    ref4 = _mmd_rbf_ref(src, tgt, 2.5, 3)
    assert jnp.allclose(out4, ref4, rtol=1e-3, atol=1e-3), (out4, ref4)

    # Test 5: linear path.
    mmd_lin = MMDLossPallas('linear')
    out5 = mmd_lin(src, tgt)
    jax.block_until_ready(out5)
    dref = jnp.mean(src, axis=0) - jnp.mean(tgt, axis=0)
    ref5 = jnp.dot(dref, dref)
    assert jnp.allclose(out5, ref5, rtol=1e-3, atol=1e-3), (out5, ref5)

    print("KERNEL_OK")
</pallas_src>

<mosaic_0001>
module attributes {stable_mosaic.version = 11 : i64} {
  func.func @_row_stats_kernel(%arg0: i32, %arg1: memref<8x32xf32, #tpu.memory_space<vmem>>, %arg2: memref<8x1xf32, #tpu.memory_space<vmem>>, %arg3: memref<1x32xf32, #tpu.memory_space<vmem>>) attributes {dimension_semantics = [#tpu.dimension_semantics<arbitrary>], iteration_bounds = array<i64: 1>, scalar_prefetch = 0 : i64, scratch_operands = 0 : i64, tpu.core_type = #tpu.core_type<tc>, window_params = [{transform_indices = @transform_0, window_bounds = array<i64: 8, 32>}, {transform_indices = @transform_1, window_bounds = array<i64: 8, 1>}, {pipeline_mode = #tpu.pipeline_mode<synchronous>, transform_indices = @transform_2, window_bounds = array<i64: 1, 32>}]} {
    %c0 = arith.constant 0 : index
    %c0_0 = arith.constant 0 : index
    %0 = vector.load %arg1[%c0, %c0_0] : memref<8x32xf32, #tpu.memory_space<vmem>>, vector<8x32xf32>
    %1 = arith.mulf %0, %0 : vector<8x32xf32>
    %cst = arith.constant dense<0.000000e+00> : vector<8xf32>
    %2 = vector.multi_reduction <add>, %1, %cst [1] : vector<8x32xf32> to vector<8xf32>
    %3 = vector.shape_cast %2 : vector<8xf32> to vector<8x1xf32>
    %c0_1 = arith.constant 0 : index
    %c0_2 = arith.constant 0 : index
    %4 = vector.load %arg2[%c0_1, %c0_2] : memref<8x1xf32, #tpu.memory_space<vmem>>, vector<8x1xf32>
    tpu.vector_store %arg2[%c0_1, %c0_2], %3 {strides = array<i32>} : memref<8x1xf32, #tpu.memory_space<vmem>>, vector<8x1xf32>,
    %c0_i32 = arith.constant 0 : i32
    %5 = arith.cmpi eq, %arg0, %c0_i32 : i32
    %6 = arith.extui %5 : i1 to i32
    %c0_i32_3 = arith.constant 0 : i32
    %7 = arith.cmpi ne, %6, %c0_i32_3 : i32
    scf.if %7 {
      %cst_9 = arith.constant 0.000000e+00 : f32
      %13 = vector.broadcast %cst_9 : f32 to vector<1x32xf32>
      %c0_10 = arith.constant 0 : index
      %c0_11 = arith.constant 0 : index
      %14 = vector.load %arg3[%c0_10, %c0_11] : memref<1x32xf32, #tpu.memory_space<vmem>>, vector<1x32xf32>
      tpu.vector_store %arg3[%c0_10, %c0_11], %13 {strides = array<i32>} : memref<1x32xf32, #tpu.memory_space<vmem>>, vector<1x32xf32>,
    } else {
    }
    %c0_4 = arith.constant 0 : index
    %c0_5 = arith.constant 0 : index
    %8 = vector.load %arg3[%c0_4, %c0_5] : memref<1x32xf32, #tpu.memory_space<vmem>>, vector<1x32xf32>
    %cst_6 = arith.constant dense<0.000000e+00> : vector<32xf32>
    %9 = vector.multi_reduction <add>, %0, %cst_6 [0] : vector<8x32xf32> to vector<32xf32>
    %10 = vector.shape_cast %9 : vector<32xf32> to vector<1x32xf32>
    %11 = arith.addf %8, %10 : vector<1x32xf32>
    %c0_7 = arith.constant 0 : index
    %c0_8 = arith.constant 0 : index
    %12 = vector.load %arg3[%c0_7, %c0_8] : memref<1x32xf32, #tpu.memory_space<vmem>>, vector<1x32xf32>
    tpu.vector_store %arg3[%c0_7, %c0_8], %11 {strides = array<i32>} : memref<1x32xf32, #tpu.memory_space<vmem>>, vector<1x32xf32>,
    return
  }
  func.func @transform_0(%arg0: i32) -> (i32, i32) {
    %c0_i32 = arith.constant 0 : i32
    %c0_i32_0 = arith.constant 0 : i32
    return %arg0, %c0_i32 : i32, i32
  }
  func.func @transform_1(%arg0: i32) -> (i32, i32) {
    %c0_i32 = arith.constant 0 : i32
    %c0_i32_0 = arith.constant 0 : i32
    return %arg0, %c0_i32 : i32, i32
  }
  func.func @transform_2(%arg0: i32) -> (i32, i32) {
    %c0_i32 = arith.constant 0 : i32
    %c0_i32_0 = arith.constant 0 : i32
    %c0_i32_1 = arith.constant 0 : i32
    return %c0_i32, %c0_i32_0 : i32, i32
  }
}

</mosaic_0001>

<llo_original>
// kernel: tpu_custom_call.1
$region0: #{tpu_custom_call.1}
  #allocation0 [shape = 'u32[]', space=smem, size = 0x4, offset = 0x4, fixed_abs, tag = 'smem constant byte address 0x4 - core index']
  #allocation1 [shape = 'u32[72,128]{1,0:T(1,128)}', space=vmem, size = 0x9000, scoped, tag = 'internal scratch']
  %s0 = inlined_call_operand.hbm [shape: f32[8,32], index: 0, kind: input, shape index: {}]
  %s1 = inlined_call_operand.vmem [shape: f32[8,1], index: 1, kind: output, shape index: {0}]
  %s2 = inlined_call_operand.hbm [shape: f32[1,32], index: 2, kind: output, shape index: {1}]
  %3 = xla_tuple %s1, %s2
  %s4 = sld [smem:[#allocation0]]
  $region30: #{tpu_custom_call.1} parent=0
    _
  %s6 = ssub.s32 1, %s4
  %s7 = scalar_select 0, %s6, %s4
  $region1: #{tpu_custom_call.1} parent=0
    #allocation2 [shape = 'u8[4096]{0}', space=vmem, size = 0x1000, scoped, tag = 'input window, operand 0, single buffered']
    #allocation3 [shape = 's32[1]{0}', space=sflag, size = 0x4, scoped, tag = 'scoped memory for tpu_custom_call.1']
    #allocation4 [shape = 's32[1]{0}', space=sflag, size = 0x4, scoped, tag = 'scoped memory for tpu_custom_call.1']
    #allocation5 [shape = 'u8[512]{0}', space=vmem, size = 0x400, scoped, tag = 'output window, operand 1, single buffered']
    %8 = vsyncpa [#allocation3], 0
    %9 = vsyncpa [#allocation4], 0
    // Predicated region
    $region2: #{tpu_custom_call.1} parent=1 // pred_check
      _
    $region3: #{tpu_custom_call.1} parent=1 // pred_check_branch
      %11 = sbr.rel (0) target = $region5
    $region4: #{tpu_custom_call.1} parent=1 // pred_region
      %13 = vsyncadd [#allocation3], 0
      %s15 = sshll.u32 %s0, 4
      %s16 = int_to_ptr.hbm [resolvable:$true] %s15
      %s17 = sshll.u32 [#allocation2], 4
      %s18 = int_to_ptr.vmem [resolvable:$true] %s17
      %20 = dma.hbm_to_vmem [thread:$0]  %s16, 128, %s18, [#allocation3]
    $region5: #{tpu_custom_call.1} parent=1 // pred_fallthru
      _
    // Predicated region
    $region6: #{tpu_custom_call.1} parent=1 // pred_check
      _
    $region7: #{tpu_custom_call.1} parent=1 // pred_check_branch
      %22 = sbr.rel (0) target = $region9
    $region8: #{tpu_custom_call.1} parent=1 // pred_region
      %24 = dma.done [#allocation3], 128
    $region9: #{tpu_custom_call.1} parent=1 // pred_fallthru
      _
    %v25 = vld [vmem:[#allocation2] sm:$0xff]
    %v26 = vmul.f32 %v25, %v25
    %vm27 = vcmask 261120
    %v28 = vsel %vm27, %v26, 0.0
    %29 = vadd.xlane.f32.xlu0 %v28
    %v30 = vpop.xlane.xlu0 %29
    %vm31 = vcmask 7168
    %32 = vst.msk [vmem:[%s1] sm:$0xff] %vm31, %v30
    %p33 = scmp.eq.s32.totalorder 0, 0
    // Predicated region
    $region10: #{tpu_custom_call.1} parent=1 // pred_check
      %p34 = pneg %p33
    $region11: #{tpu_custom_call.1} parent=1 // pred_check_branch
      %36 = sbr.rel (%p34) target = $region13
    $region12: #{tpu_custom_call.1} parent=1 // pred_region
      %vm37 = vcmask 253952
      %38 = vst.msk [vmem:[#allocation5] sm:$0x1] %vm37, 0.0
    $region13: #{tpu_custom_call.1} parent=1 // pred_fallthru
      _
    %v39 = vld [vmem:[#allocation5] sm:$0x1]
    %v40 = vsel %vm27, %v25, 0.0
    %v41 = vrot.slane %v40, 4
    %v42 = vadd.f32 %v40, %v41
    %v43 = vrot.slane %v42, 2
    %v44 = vadd.f32 %v42, %v43
    %v45 = vrot.slane %v44, 1
    %v46 = vadd.f32 %v44, %v45
    %v47 = vadd.f32 %v39, %v46
    %vm48 = vcmask 253952
    %49 = vst.msk [vmem:[#allocation5] sm:$0x1] %vm48, %v47
    // Predicated region
    $region14: #{tpu_custom_call.1} parent=1 // pred_check
      _
    $region15: #{tpu_custom_call.1} parent=1 // pred_check_branch
      %51 = sbr.rel (0) target = $region17
    $region16: #{tpu_custom_call.1} parent=1 // pred_region
      _
    $region17: #{tpu_custom_call.1} parent=1 // pred_fallthru
      _
    // Predicated region
    $region18: #{tpu_custom_call.1} parent=1 // pred_check
      _
    $region19: #{tpu_custom_call.1} parent=1 // pred_check_branch
      %53 = sbr.rel (0) target = $region21
    $region20: #{tpu_custom_call.1} parent=1 // pred_region
      %55 = vsyncadd [#allocation4], 0
      %s57 = sshll.u32 [#allocation5], 4
      %s58 = int_to_ptr.vmem [resolvable:$true] %s57
      %s59 = sshll.u32 %s2, 4
      %s60 = int_to_ptr.hbm [resolvable:$true] %s59
      %62 = dma.vmem_to_hbm [thread:$0]  %s58, 16, %s60, [#allocation4]
    $region21: #{tpu_custom_call.1} parent=1 // pred_fallthru
      _
    // Predicated region
    $region22: #{tpu_custom_call.1} parent=1 // pred_check
      _
    $region23: #{tpu_custom_call.1} parent=1 // pred_check_branch
      %64 = sbr.rel (0) target = $region25
    $region24: #{tpu_custom_call.1} parent=1 // pred_region
      _
    $region25: #{tpu_custom_call.1} parent=1 // pred_fallthru
      _
    // Predicated region
    $region26: #{tpu_custom_call.1} parent=1 // pred_check
      _
    $region27: #{tpu_custom_call.1} parent=1 // pred_check_branch
      %66 = sbr.rel (0) target = $region29
    $region28: #{tpu_custom_call.1} parent=1 // pred_region
      %68 = dma.done [#allocation4], 16
    $region29: #{tpu_custom_call.1} parent=1 // pred_fallthru
      _
    %69 = vsyncpa [#allocation3], 1
    %70 = vsyncpa [#allocation4], 1

</llo_original>
